<compile_context>
chip_gen: v7x
topology: tpu7x:2x2x1
jax: 0.10.0
libtpu: 0.0.40
codegen_flags: <defaults>
</compile_context>

<pallas_src>
import functools

import jax
import jax.numpy as jnp
from jax import lax
from jax.experimental import pallas as pl
from jax.experimental.pallas import tpu as pltpu

MATMUL_DTYPE = jnp.bfloat16   # MXU-native on v6e/v7x, halves weight/activation DMA
LANE = 128


# ---------------------------------------------------------------------------
# Phase 1: LSTM recurrence, grid over time, (h, c) carried in VMEM scratch.
# ---------------------------------------------------------------------------
def lstm_recurrence_kernel(xe_ref,   # (1, B, D)   bf16  current time-step activations
                           w_ref,    # (D+H, 4H)   bf16  fused [Wih^T ; Whh^T] (resident)
                           b_ref,    # (B, 4H)     f32   pre-broadcast b_ih + b_hh (resident)
                           hs_ref,   # (1, B, H)   f32   hidden-state output block
                           h_scr,    # (B, H)      f32   persistent hidden state
                           c_scr):   # (B, H)      f32   persistent cell state
    t = pl.program_id(0)
    H = h_scr.shape[1]

    @pl.when(t == 0)
    def _():
        h_scr[...] = jnp.zeros_like(h_scr)
        c_scr[...] = jnp.zeros_like(c_scr)

    x_t = xe_ref[0]                                   # (B, D) bf16
    h = h_scr[...]                                    # (B, H) f32
    c = c_scr[...]                                    # (B, H) f32

    # Fused gate matmul: one (B, D+H) x (D+H, 4H) MXU push per step.
    xh = jnp.concatenate([x_t, h.astype(MATMUL_DTYPE)], axis=1)
    gates = jnp.dot(xh, w_ref[...], preferred_element_type=jnp.float32) + b_ref[...]

    # PyTorch gate order: i, f, g, o  (all elementwise math in f32).
    i_g = jax.nn.sigmoid(gates[:, 0 * H:1 * H])
    f_g = jax.nn.sigmoid(gates[:, 1 * H:2 * H])
    g_g = jnp.tanh(gates[:, 2 * H:3 * H])
    o_g = jax.nn.sigmoid(gates[:, 3 * H:4 * H])

    c_new = f_g * c + i_g * g_g
    h_new = o_g * jnp.tanh(c_new)

    h_scr[...] = h_new
    c_scr[...] = c_new
    hs_ref[0] = h_new


# ---------------------------------------------------------------------------
# Phase 2: batched classifier + softmax over row tiles of (B*T, H).
# ---------------------------------------------------------------------------
def classifier_softmax_kernel(hs_ref,   # (TR, H)   f32   row tile of hidden states
                              w_ref,    # (H, Vp)   bf16  pre-transposed, lane-padded
                              b_ref,    # (1, Vp)   f32   bias (padded lanes = -1e30)
                              out_ref): # (TR, Vp)  f32   softmax probabilities
    logits = jnp.dot(hs_ref[...].astype(MATMUL_DTYPE), w_ref[...],
                     preferred_element_type=jnp.float32) + b_ref[...]
    m = jnp.max(logits, axis=-1, keepdims=True)
    e = jnp.exp(logits - m)
    denom = jnp.sum(e, axis=-1, keepdims=True)
    out_ref[...] = e * pl.reciprocal(denom, approx=True)   # divide on the EUP


# ---------------------------------------------------------------------------
# Wrapper: inference path of LanguageModel.forward (y is None).
# ---------------------------------------------------------------------------
def language_model_forward(x_tokens, mask, params, *, row_tile=8):
    """softmax(classify(lstm(emb(x)))). `mask` is unused when y is None."""
    del mask
    # TODO(synk): training branch (masked cross_entropy over boolean-gathered rows)
    # is not implemented; only the y=None inference path is reproduced.
    emb, w_ih, w_hh, b_ih, b_hh, w_cl, b_cl = (
        params["embedding"], params["w_ih"], params["w_hh"],
        params["b_ih"], params["b_hh"], params["w_cl"], params["b_cl"])

    B, T = x_tokens.shape
    V, D = emb.shape
    H = w_hh.shape[1]
    Vp = pl.cdiv(V, LANE) * LANE                      # lane-dense padded vocab

    # Embedding gather directly into time-major layout: transpose the tiny int32
    # token matrix, not the embedded activations.
    xe = jnp.take(emb, x_tokens.T, axis=0).astype(MATMUL_DTYPE)      # (T, B, D)

    # Pre-fused / pre-transposed LSTM weights and pre-broadcast bias.
    w_fused = jnp.concatenate([w_ih, w_hh], axis=1).T.astype(MATMUL_DTYPE)  # (D+H, 4H)
    b_fused = jnp.broadcast_to((b_ih + b_hh).astype(jnp.float32)[None, :], (B, 4 * H))

    # Pre-transposed, lane-padded classifier. Padded classes get -1e30 bias so
    # exp() of their logits is exactly 0 (softmax mass unchanged).
    wcl_t = jnp.zeros((H, Vp), MATMUL_DTYPE).at[:, :V].set(w_cl.T.astype(MATMUL_DTYPE))
    bcl_p = jnp.full((1, Vp), -1e30, jnp.float32).at[0, :V].set(b_cl.astype(jnp.float32))

    vmem_cap = 32 * 1024 * 1024

    # ---- Phase 1: recurrence ------------------------------------------------
    hs = pl.pallas_call(
        lstm_recurrence_kernel,
        out_shape=jax.ShapeDtypeStruct((T, B, H), jnp.float32),
        grid_spec=pltpu.PrefetchScalarGridSpec(
            num_scalar_prefetch=0,
            grid=(T,),
            in_specs=[
                pl.BlockSpec((1, B, D), lambda t: (t, 0, 0)),
                pl.BlockSpec((D + H, 4 * H), lambda t: (0, 0)),
                pl.BlockSpec((B, 4 * H), lambda t: (0, 0)),
            ],
            out_specs=pl.BlockSpec((1, B, H), lambda t: (t, 0, 0)),
            scratch_shapes=[pltpu.VMEM((B, H), jnp.float32),
                            pltpu.VMEM((B, H), jnp.float32)],
        ),
        compiler_params=pltpu.CompilerParams(
            dimension_semantics=("arbitrary",),       # sequential recurrence
            vmem_limit_bytes=vmem_cap),
    )(xe, w_fused, b_fused)

    # Reorder only the *small* hidden-state tensor to batch-major so the large
    # probability output is produced lane-dense in its final (B, T, V) layout.
    n_rows = B * T
    hs_2d = jnp.transpose(hs, (1, 0, 2)).reshape(n_rows, H)

    tr = row_tile if (n_rows % row_tile == 0) else n_rows

    # ---- Phase 2: classifier + softmax --------------------------------------
    probs_p = pl.pallas_call(
        classifier_softmax_kernel,
        out_shape=jax.ShapeDtypeStruct((n_rows, Vp), jnp.float32),
        grid_spec=pltpu.PrefetchScalarGridSpec(
            num_scalar_prefetch=0,
            grid=(n_rows // tr,),
            in_specs=[
                pl.BlockSpec((tr, H), lambda r: (r, 0)),
                pl.BlockSpec((H, Vp), lambda r: (0, 0)),
                pl.BlockSpec((1, Vp), lambda r: (0, 0)),
            ],
            out_specs=pl.BlockSpec((tr, Vp), lambda r: (r, 0)),
        ),
        compiler_params=pltpu.CompilerParams(
            dimension_semantics=("parallel",),
            vmem_limit_bytes=vmem_cap),
    )(hs_2d, wcl_t, bcl_p)

    return probs_p.reshape(B, T, Vp)[:, :, :V]        # (B, T, V)


# ---------------------------------------------------------------------------
# Pure-JAX f32 reference (module semantics), for correctness checking.
# ---------------------------------------------------------------------------
def reference_forward(x_tokens, params):
    emb, w_ih, w_hh, b_ih, b_hh, w_cl, b_cl = (
        params["embedding"], params["w_ih"], params["w_hh"],
        params["b_ih"], params["b_hh"], params["w_cl"], params["b_cl"])
    H = w_hh.shape[1]
    xe = jnp.take(emb, x_tokens, axis=0)              # (B, T, D)
    B = xe.shape[0]

    def cell(carry, x_t):
        h, c = carry
        gates = x_t @ w_ih.T + b_ih + h @ w_hh.T + b_hh
        i = jax.nn.sigmoid(gates[:, 0 * H:1 * H])
        f = jax.nn.sigmoid(gates[:, 1 * H:2 * H])
        g = jnp.tanh(gates[:, 2 * H:3 * H])
        o = jax.nn.sigmoid(gates[:, 3 * H:4 * H])
        c = f * c + i * g
        h = o * jnp.tanh(c)
        return (h, c), h

    h0 = jnp.zeros((B, H), jnp.float32)
    c0 = jnp.zeros((B, H), jnp.float32)
    _, hs = lax.scan(cell, (h0, c0), jnp.transpose(xe, (1, 0, 2)))  # (T, B, H)
    hs = jnp.transpose(hs, (1, 0, 2))                  # (B, T, H)
    logits = hs @ w_cl.T + b_cl
    return jax.nn.softmax(logits, axis=-1)


def init_params(key, vocab_size, input_dim):
    D = H = input_dim
    keys = jax.random.split(key, 7)
    s = 1.0 / jnp.sqrt(jnp.float32(H))
    return {
        "embedding": jax.random.normal(keys[0], (vocab_size, D), jnp.float32),
        "w_ih": jax.random.uniform(keys[1], (4 * H, D), jnp.float32, -s, s),
        "w_hh": jax.random.uniform(keys[2], (4 * H, H), jnp.float32, -s, s),
        "b_ih": jax.random.uniform(keys[3], (4 * H,), jnp.float32, -s, s),
        "b_hh": jax.random.uniform(keys[4], (4 * H,), jnp.float32, -s, s),
        "w_cl": jax.random.uniform(keys[5], (vocab_size, H), jnp.float32, -s, s),
        "b_cl": jax.random.uniform(keys[6], (vocab_size,), jnp.float32, -s, s),
    }


if __name__ == "__main__":
    VOCAB = 64     # len(vocab)
    D = 32         # input_dim == hidden_dim
    B, T = 2, 8

    key = jax.random.PRNGKey(0)
    k_par, k_x, k_m = jax.random.split(key, 3)

    params = init_params(k_par, VOCAB, D)
    x = jax.random.randint(k_x, (B, T), 0, VOCAB, dtype=jnp.int32)
    mask = jax.random.bernoulli(k_m, 0.8, (B, T))      # unused in the y=None branch

    fwd = jax.jit(functools.partial(language_model_forward, params=params))
    probs = jax.block_until_ready(fwd(x, mask))

    ref = reference_forward(x, params)
    assert probs.shape == (B, T, VOCAB)
    # bf16 matmul inputs + approx reciprocal vs pure-f32 reference: loose-but-
    # structural tolerance (observed error is ~1e-4; any gate/layout/padding bug
    # would be orders of magnitude larger).
    assert jnp.allclose(probs, ref, atol=5e-3), "mismatch vs reference"

    print("KERNEL_OK")
</pallas_src>

<mosaic_0001>
module attributes {stable_mosaic.version = 11 : i64} {
  func.func @classifier_softmax_kernel(%arg0: i32, %arg1: memref<8x32xf32, #tpu.memory_space<vmem>>, %arg2: memref<32x128xbf16, #tpu.memory_space<vmem>>, %arg3: memref<1x128xf32, #tpu.memory_space<vmem>>, %arg4: memref<8x128xf32, #tpu.memory_space<vmem>>) attributes {dimension_semantics = [#tpu.dimension_semantics<parallel>], iteration_bounds = array<i64: 2>, scalar_prefetch = 0 : i64, scratch_operands = 0 : i64, tpu.core_type = #tpu.core_type<tc>, window_params = [{transform_indices = @transform_0, window_bounds = array<i64: 8, 32>}, {pipeline_mode = #tpu.pipeline_mode<synchronous>, transform_indices = @transform_1, window_bounds = array<i64: 32, 128>}, {pipeline_mode = #tpu.pipeline_mode<synchronous>, transform_indices = @transform_2, window_bounds = array<i64: 1, 128>}, {transform_indices = @transform_3, window_bounds = array<i64: 8, 128>}]} {
    %c0 = arith.constant 0 : index
    %c0_0 = arith.constant 0 : index
    %0 = vector.load %arg1[%c0, %c0_0] : memref<8x32xf32, #tpu.memory_space<vmem>>, vector<8x32xf32>
    %1 = arith.truncf %0 : vector<8x32xf32> to vector<8x32xbf16>
    %c0_1 = arith.constant 0 : index
    %c0_2 = arith.constant 0 : index
    %2 = vector.load %arg2[%c0_1, %c0_2] : memref<32x128xbf16, #tpu.memory_space<vmem>>, vector<32x128xbf16>
    %cst = arith.constant dense<0.000000e+00> : vector<8x128xf32>
    %3 = tpu.matmul %1, %2, %cst {dimension_numbers = #tpu.dot_dimension_numbers<[1], [0], [0], [1], [0, 0, 1, 1], [], []>} : vector<8x32xbf16>, vector<32x128xbf16>, vector<8x128xf32> -> vector<8x128xf32>
    %c0_3 = arith.constant 0 : index
    %c0_4 = arith.constant 0 : index
    %4 = vector.load %arg3[%c0_3, %c0_4] : memref<1x128xf32, #tpu.memory_space<vmem>>, vector<1x128xf32>
    %5 = vector.broadcast %4 : vector<1x128xf32> to vector<8x128xf32>
    %6 = arith.addf %3, %5 : vector<8x128xf32>
    %cst_5 = arith.constant dense<0xFF800000> : vector<8xf32>
    %7 = vector.multi_reduction <maximumf>, %6, %cst_5 [1] : vector<8x128xf32> to vector<8xf32>
    %8 = vector.shape_cast %7 : vector<8xf32> to vector<8x1xf32>
    %9 = vector.broadcast %8 : vector<8x1xf32> to vector<8x128xf32>
    %10 = arith.subf %6, %9 : vector<8x128xf32>
    %11 = math.exp %10 : vector<8x128xf32>
    %cst_6 = arith.constant dense<0.000000e+00> : vector<8xf32>
    %12 = vector.multi_reduction <add>, %11, %cst_6 [1] : vector<8x128xf32> to vector<8xf32>
    %13 = vector.shape_cast %12 : vector<8xf32> to vector<8x1xf32>
    %14 = tpu.reciprocal %13 {approx = true} : vector<8x1xf32> -> vector<8x1xf32>
    %15 = vector.broadcast %14 : vector<8x1xf32> to vector<8x128xf32>
    %16 = arith.mulf %11, %15 : vector<8x128xf32>
    %c0_7 = arith.constant 0 : index
    %c0_8 = arith.constant 0 : index
    %17 = vector.load %arg4[%c0_7, %c0_8] : memref<8x128xf32, #tpu.memory_space<vmem>>, vector<8x128xf32>
    tpu.vector_store %arg4[%c0_7, %c0_8], %16 {strides = array<i32>} : memref<8x128xf32, #tpu.memory_space<vmem>>, vector<8x128xf32>,
    return
  }
  func.func @transform_0(%arg0: i32) -> (i32, i32) {
    %c0_i32 = arith.constant 0 : i32
    %c0_i32_0 = arith.constant 0 : i32
    return %arg0, %c0_i32 : i32, i32
  }
  func.func @transform_1(%arg0: i32) -> (i32, i32) {
    %c0_i32 = arith.constant 0 : i32
    %c0_i32_0 = arith.constant 0 : i32
    %c0_i32_1 = arith.constant 0 : i32
    return %c0_i32, %c0_i32_0 : i32, i32
  }
  func.func @transform_2(%arg0: i32) -> (i32, i32) {
    %c0_i32 = arith.constant 0 : i32
    %c0_i32_0 = arith.constant 0 : i32
    %c0_i32_1 = arith.constant 0 : i32
    return %c0_i32, %c0_i32_0 : i32, i32
  }
  func.func @transform_3(%arg0: i32) -> (i32, i32) {
    %c0_i32 = arith.constant 0 : i32
    %c0_i32_0 = arith.constant 0 : i32
    return %arg0, %c0_i32 : i32, i32
  }
}

module attributes {stable_mosaic.version = 11 : i64} {
  func.func @lstm_recurrence_kernel(%arg0: i32, %arg1: memref<1x2x32xbf16, #tpu.memory_space<vmem>>, %arg2: memref<64x128xbf16, #tpu.memory_space<vmem>>, %arg3: memref<2x128xf32, #tpu.memory_space<vmem>>, %arg4: memref<1x2x32xf32, #tpu.memory_space<vmem>>, %arg5: memref<2x32xf32, #tpu.memory_space<vmem>>, %arg6: memref<2x32xf32, #tpu.memory_space<vmem>>) attributes {dimension_semantics = [#tpu.dimension_semantics<arbitrary>], iteration_bounds = array<i64: 8>, scalar_prefetch = 0 : i64, scratch_operands = 2 : i64, tpu.core_type = #tpu.core_type<tc>, window_params = [{transform_indices = @transform_0, window_bounds = array<i64: 1, 2, 32>}, {pipeline_mode = #tpu.pipeline_mode<synchronous>, transform_indices = @transform_1, window_bounds = array<i64: 64, 128>}, {pipeline_mode = #tpu.pipeline_mode<synchronous>, transform_indices = @transform_2, window_bounds = array<i64: 2, 128>}, {transform_indices = @transform_3, window_bounds = array<i64: 1, 2, 32>}]} {
    %c0_i32 = arith.constant 0 : i32
    %0 = arith.cmpi eq, %arg0, %c0_i32 : i32
    %1 = arith.extui %0 : i1 to i32
    %c0_i32_0 = arith.constant 0 : i32
    %2 = arith.cmpi ne, %1, %c0_i32_0 : i32
    scf.if %2 {
      %cst_21 = arith.constant 0.000000e+00 : f32
      %43 = vector.broadcast %cst_21 : f32 to vector<2x32xf32>
      %c0_22 = arith.constant 0 : index
      %c0_23 = arith.constant 0 : index
      %44 = vector.load %arg5[%c0_22, %c0_23] : memref<2x32xf32, #tpu.memory_space<vmem>>, vector<2x32xf32>
      tpu.vector_store %arg5[%c0_22, %c0_23], %43 {strides = array<i32>} : memref<2x32xf32, #tpu.memory_space<vmem>>, vector<2x32xf32>,
      %cst_24 = arith.constant 0.000000e+00 : f32
      %45 = vector.broadcast %cst_24 : f32 to vector<2x32xf32>
      %c0_25 = arith.constant 0 : index
      %c0_26 = arith.constant 0 : index
      %46 = vector.load %arg6[%c0_25, %c0_26] : memref<2x32xf32, #tpu.memory_space<vmem>>, vector<2x32xf32>
      tpu.vector_store %arg6[%c0_25, %c0_26], %45 {strides = array<i32>} : memref<2x32xf32, #tpu.memory_space<vmem>>, vector<2x32xf32>,
    } else {
    }
    %c0 = arith.constant 0 : index
    %c0_1 = arith.constant 0 : index
    %c0_2 = arith.constant 0 : index
    %3 = vector.load %arg1[%c0, %c0_1, %c0_2] : memref<1x2x32xbf16, #tpu.memory_space<vmem>>, vector<1x2x32xbf16>
    %4 = vector.shape_cast %3 : vector<1x2x32xbf16> to vector<2x32xbf16>
    %c0_3 = arith.constant 0 : index
    %c0_4 = arith.constant 0 : index
    %5 = vector.load %arg5[%c0_3, %c0_4] : memref<2x32xf32, #tpu.memory_space<vmem>>, vector<2x32xf32>
    %c0_5 = arith.constant 0 : index
    %c0_6 = arith.constant 0 : index
    %6 = vector.load %arg6[%c0_5, %c0_6] : memref<2x32xf32, #tpu.memory_space<vmem>>, vector<2x32xf32>
    %7 = arith.truncf %5 : vector<2x32xf32> to vector<2x32xbf16>
    %8 = tpu.concatenate %4, %7 in 1 : vector<2x32xbf16>, vector<2x32xbf16> -> vector<2x64xbf16>
    %c0_7 = arith.constant 0 : index
    %c0_8 = arith.constant 0 : index
    %9 = vector.load %arg2[%c0_7, %c0_8] : memref<64x128xbf16, #tpu.memory_space<vmem>>, vector<64x128xbf16>
    %cst = arith.constant dense<0.000000e+00> : vector<2x128xf32>
    %10 = tpu.matmul %8, %9, %cst {dimension_numbers = #tpu.dot_dimension_numbers<[1], [0], [0], [1], [0, 0, 1, 1], [], []>} : vector<2x64xbf16>, vector<64x128xbf16>, vector<2x128xf32> -> vector<2x128xf32>
    %c0_9 = arith.constant 0 : index
    %c0_10 = arith.constant 0 : index
    %11 = vector.load %arg3[%c0_9, %c0_10] : memref<2x128xf32, #tpu.memory_space<vmem>>, vector<2x128xf32>
    %12 = arith.addf %10, %11 : vector<2x128xf32>
    %13 = vector.extract_strided_slice %12 {offsets = [0, 0], sizes = [2, 32], strides = [1, 1]} : vector<2x128xf32> to vector<2x32xf32>
    %14 = arith.negf %13 : vector<2x32xf32>
    %15 = math.exp %14 : vector<2x32xf32>
    %cst_11 = arith.constant 1.000000e+00 : f32
    %16 = vector.broadcast %cst_11 : f32 to vector<2x32xf32>
    %17 = arith.addf %16, %15 : vector<2x32xf32>
    %18 = arith.divf %16, %17 : vector<2x32xf32>
    %19 = vector.extract_strided_slice %12 {offsets = [0, 32], sizes = [2, 32], strides = [1, 1]} : vector<2x128xf32> to vector<2x32xf32>
    %20 = arith.negf %19 : vector<2x32xf32>
    %21 = math.exp %20 : vector<2x32xf32>
    %cst_12 = arith.constant 1.000000e+00 : f32
    %22 = vector.broadcast %cst_12 : f32 to vector<2x32xf32>
    %23 = arith.addf %22, %21 : vector<2x32xf32>
    %24 = arith.divf %22, %23 : vector<2x32xf32>
    %25 = vector.extract_strided_slice %12 {offsets = [0, 64], sizes = [2, 32], strides = [1, 1]} : vector<2x128xf32> to vector<2x32xf32>
    %26 = math.tanh %25 : vector<2x32xf32>
    %27 = vector.extract_strided_slice %12 {offsets = [0, 96], sizes = [2, 32], strides = [1, 1]} : vector<2x128xf32> to vector<2x32xf32>
    %28 = arith.negf %27 : vector<2x32xf32>
    %29 = math.exp %28 : vector<2x32xf32>
    %cst_13 = arith.constant 1.000000e+00 : f32
    %30 = vector.broadcast %cst_13 : f32 to vector<2x32xf32>
    %31 = arith.addf %30, %29 : vector<2x32xf32>
    %32 = arith.divf %30, %31 : vector<2x32xf32>
    %33 = arith.mulf %24, %6 : vector<2x32xf32>
    %34 = arith.mulf %18, %26 : vector<2x32xf32>
    %35 = arith.addf %33, %34 : vector<2x32xf32>
    %36 = math.tanh %35 : vector<2x32xf32>
    %37 = arith.mulf %32, %36 : vector<2x32xf32>
    %c0_14 = arith.constant 0 : index
    %c0_15 = arith.constant 0 : index
    %38 = vector.load %arg5[%c0_14, %c0_15] : memref<2x32xf32, #tpu.memory_space<vmem>>, vector<2x32xf32>
    tpu.vector_store %arg5[%c0_14, %c0_15], %37 {strides = array<i32>} : memref<2x32xf32, #tpu.memory_space<vmem>>, vector<2x32xf32>,
    %c0_16 = arith.constant 0 : index
    %c0_17 = arith.constant 0 : index
    %39 = vector.load %arg6[%c0_16, %c0_17] : memref<2x32xf32, #tpu.memory_space<vmem>>, vector<2x32xf32>
    tpu.vector_store %arg6[%c0_16, %c0_17], %35 {strides = array<i32>} : memref<2x32xf32, #tpu.memory_space<vmem>>, vector<2x32xf32>,
    %c0_18 = arith.constant 0 : index
    %c0_19 = arith.constant 0 : index
    %c0_20 = arith.constant 0 : index
    %40 = vector.load %arg4[%c0_18, %c0_19, %c0_20] : memref<1x2x32xf32, #tpu.memory_space<vmem>>, vector<1x2x32xf32>
    %41 = vector.shape_cast %40 : vector<1x2x32xf32> to vector<2x32xf32>
    %42 = vector.shape_cast %37 : vector<2x32xf32> to vector<1x2x32xf32>
    tpu.vector_store %arg4[%c0_18, %c0_19, %c0_20], %42 {strides = array<i32>} : memref<1x2x32xf32, #tpu.memory_space<vmem>>, vector<1x2x32xf32>,
    return
  }
  func.func @transform_0(%arg0: i32) -> (i32, i32, i32) {
    %c0_i32 = arith.constant 0 : i32
    %c0_i32_0 = arith.constant 0 : i32
    %c0_i32_1 = arith.constant 0 : i32
    return %arg0, %c0_i32, %c0_i32_0 : i32, i32, i32
  }
  func.func @transform_1(%arg0: i32) -> (i32, i32) {
    %c0_i32 = arith.constant 0 : i32
    %c0_i32_0 = arith.constant 0 : i32
    %c0_i32_1 = arith.constant 0 : i32
    return %c0_i32, %c0_i32_0 : i32, i32
  }
  func.func @transform_2(%arg0: i32) -> (i32, i32) {
    %c0_i32 = arith.constant 0 : i32
    %c0_i32_0 = arith.constant 0 : i32
    %c0_i32_1 = arith.constant 0 : i32
    return %c0_i32, %c0_i32_0 : i32, i32
  }
  func.func @transform_3(%arg0: i32) -> (i32, i32, i32) {
    %c0_i32 = arith.constant 0 : i32
    %c0_i32_0 = arith.constant 0 : i32
    %c0_i32_1 = arith.constant 0 : i32
    return %arg0, %c0_i32, %c0_i32_0 : i32, i32, i32
  }
}

</mosaic_0001>

<llo_original>
// kernel: language_model_forward.2
$region0: #{language_model_forward.2}
  #allocation0 [shape = 'u32[]', space=smem, size = 0x4, offset = 0x4, fixed_abs, tag = 'smem constant byte address 0x4 - core index']
  #allocation1 [shape = 'u32[144,128]{1,0:T(1,128)}', space=vmem, size = 0x12000, scoped, tag = 'internal scratch']
  #allocation2 [shape = 'f32[2,32]{1,0:T(2,128)}', space=vmem, size = 0x400, scoped, tag = 'scratch operand']
  #allocation3 [shape = 'f32[2,32]{1,0:T(2,128)}', space=vmem, size = 0x400, scoped, tag = 'scratch operand']
  %s0 = inlined_call_operand.vmem [shape: bf16[8,2,32], index: 0, kind: input, shape index: {}]
  %s1 = inlined_call_operand.vmem [shape: bf16[64,128], index: 1, kind: input, shape index: {}]
  %s2 = inlined_call_operand.vmem [shape: f32[2,128], index: 2, kind: input, shape index: {}]
  %s3 = inlined_call_operand.vmem [shape: f32[8,2,32], index: 3, kind: output, shape index: {}]
  %s4 = sld [smem:[#allocation0]]
  $region49: #{language_model_forward.2} parent=0
    _
  %s6 = ssub.s32 1, %s4
  %s7 = scalar_select 0, %s6, %s4
  loop: start=0, step=1, limit=10
  $region2: #{language_model_forward.2} parent=0 // loop_pre_header
    _
  $region3: #{language_model_forward.2} parent=0 // loop_header
    %s9 = sphi 0, %s13
    %p10 = scmp.ge.s32.totalorder %s9, 10
    %s19 = sphi 0, %s21
    %s22 = sphi 0, %s19
    %s23 = sphi 0, %s22
    %s39 = sphi 0, %s23
    %s43 = sphi 0, %s43
    %s45 = sphi 0, %s43
    %s46 = sphi 0, %s45
    %s60 = sphi 0, %s46
    %s64 = sphi 0, %s64
    %s66 = sphi 0, %s64
    %s67 = sphi 0, %s66
    %s81 = sphi 0, %s67
    %s87 = sphi 0, %s89
    %s90 = sphi 0, %s87
    %s91 = sphi 0, %s90
    %s107 = sphi 0, %s91
  $region4: #{language_model_forward.2} parent=0 // loop_header_branch
    %12 = sbr.rel (%p10) target = $region8
  $region5: #{language_model_forward.2} parent=0 // loop_body
    %s14 = ssub.s32 %s9, 1
    %s15 = ssub.s32 %s9, 2
    %s16 = sadd.s32 %s9, 1
    %s17 = ssub.s32 %s9, %s16
    %p18 = scmp.eq.s32.totalorder %s17, 0
    %s20 = sadd.s32 %s19, 1
    %s21 = scalar_select %p18, %s19, %s20
    %p24 = pneg %p18
    %p25 = scmp.eq.s32.totalorder %s9, 7
    %p26 = por %p24, %p25
    %p27 = scmp.ne.s32.totalorder %s19, %s22
    %p28 = scmp.eq.s32.totalorder %s9, 0
    %p29 = por %p27, %p28
    %p30 = scmp.ne.s32.totalorder %s19, %s22
    %p31 = scmp.eq.s32.totalorder %s14, 7
    %p32 = por %p30, %p31
    %p33 = scmp.ne.s32.totalorder %s22, %s23
    %p34 = scmp.eq.s32.totalorder %s14, 0
    %p35 = por %p33, %p34
    %p36 = scmp.ne.s32.totalorder %s22, %s23
    %p37 = scmp.eq.s32.totalorder %s15, 7
    %p38 = por %p36, %p37
    %p40 = scmp.ne.s32.totalorder %s23, %s39
    %p41 = scmp.eq.s32.totalorder %s15, 0
    %p42 = por %p40, %p41
    %s44 = sadd.s32 %s43, 1
    %p47 = scmp.eq.s32.totalorder %s9, 7
    %p48 = scmp.ne.s32.totalorder %s43, %s45
    %p49 = scmp.eq.s32.totalorder %s9, 0
    %p50 = por %p48, %p49
    %p51 = scmp.ne.s32.totalorder %s43, %s45
    %p52 = scmp.eq.s32.totalorder %s14, 7
    %p53 = por %p51, %p52
    %p54 = scmp.ne.s32.totalorder %s45, %s46
    %p55 = scmp.eq.s32.totalorder %s14, 0
    %p56 = por %p54, %p55
    %p57 = scmp.ne.s32.totalorder %s45, %s46
    %p58 = scmp.eq.s32.totalorder %s15, 7
    %p59 = por %p57, %p58
    %p61 = scmp.ne.s32.totalorder %s46, %s60
    %p62 = scmp.eq.s32.totalorder %s15, 0
    %p63 = por %p61, %p62
    %s65 = sadd.s32 %s64, 1
    %p68 = scmp.eq.s32.totalorder %s9, 7
    %p69 = scmp.ne.s32.totalorder %s64, %s66
    %p70 = scmp.eq.s32.totalorder %s9, 0
    %p71 = por %p69, %p70
    %p72 = scmp.ne.s32.totalorder %s64, %s66
    %p73 = scmp.eq.s32.totalorder %s14, 7
    %p74 = por %p72, %p73
    %p75 = scmp.ne.s32.totalorder %s66, %s67
    %p76 = scmp.eq.s32.totalorder %s14, 0
    %p77 = por %p75, %p76
    %p78 = scmp.ne.s32.totalorder %s66, %s67
    %p79 = scmp.eq.s32.totalorder %s15, 7
    %p80 = por %p78, %p79
    %p82 = scmp.ne.s32.totalorder %s67, %s81
    %p83 = scmp.eq.s32.totalorder %s15, 0
    %p84 = por %p82, %p83
    %s85 = ssub.s32 %s9, %s16
    %p86 = scmp.eq.s32.totalorder %s85, 0
    %s88 = sadd.s32 %s87, 1
    %s89 = scalar_select %p86, %s87, %s88
    %p92 = pneg %p86
    %p93 = scmp.eq.s32.totalorder %s9, 7
    %p94 = por %p92, %p93
    %p95 = scmp.ne.s32.totalorder %s87, %s90
    %p96 = scmp.eq.s32.totalorder %s9, 0
    %p97 = por %p95, %p96
    %p98 = scmp.ne.s32.totalorder %s87, %s90
    %p99 = scmp.eq.s32.totalorder %s14, 7
    %p100 = por %p98, %p99
    %p101 = scmp.ne.s32.totalorder %s90, %s91
    %p102 = scmp.eq.s32.totalorder %s14, 0
    %p103 = por %p101, %p102
    %p104 = scmp.ne.s32.totalorder %s90, %s91
    %p105 = scmp.eq.s32.totalorder %s15, 7
    %p106 = por %p104, %p105
    %p108 = scmp.ne.s32.totalorder %s91, %s107
    %p109 = scmp.eq.s32.totalorder %s15, 0
    %p110 = por %p108, %p109
    %p111 = scmp.le.s32.totalorder 1, %s9
    %p112 = scmp.lt.s32.totalorder %s9, 9
    %p113 = pnand %p111, %p112
    %p114 = pneg %p113
    // Predicated region
    $region9: #{language_model_forward.2} parent=5 // pred_check
      _
    $region10: #{language_model_forward.2} parent=5 // pred_check_branch
      %116 = sbr.rel (%p113) target = $region12
    $region11: #{language_model_forward.2} parent=5 // pred_region
      %s117 = ssub.s32 %s9, 1
      // Predicated region
      $region13: #{language_model_forward.2} parent=11 // pred_check
        %p118 = pneg %p56
      $region14: #{language_model_forward.2} parent=11 // pred_check_branch
        %120 = sbr.rel (%p118) target = $region16
      $region15: #{language_model_forward.2} parent=11 // pred_region
        _
      $region16: #{language_model_forward.2} parent=11 // pred_fallthru
        _
      // Predicated region
      $region17: #{language_model_forward.2} parent=11 // pred_check
        %p121 = pneg %p77
      $region18: #{language_model_forward.2} parent=11 // pred_check_branch
        %123 = sbr.rel (%p121) target = $region20
      $region19: #{language_model_forward.2} parent=11 // pred_region
        _
      $region20: #{language_model_forward.2} parent=11 // pred_fallthru
        _
    $region12: #{language_model_forward.2} parent=5 // pred_fallthru
      _
    %p124 = scmp.lt.s32.totalorder %s9, 8
    // Predicated region
    $region21: #{language_model_forward.2} parent=5 // pred_check
      %p125 = pneg %p124
    $region22: #{language_model_forward.2} parent=5 // pred_check_branch
      %127 = sbr.rel (%p125) target = $region24
    $region23: #{language_model_forward.2} parent=5 // pred_region
      // Predicated region
      $region25: #{language_model_forward.2} parent=23 // pred_check
        %p128 = pneg %p29
      $region26: #{language_model_forward.2} parent=23 // pred_check_branch
        %130 = sbr.rel (%p128) target = $region28
      $region27: #{language_model_forward.2} parent=23 // pred_region
        %p131 = scmp.lt.s32.totalorder %s9, 7
        %s132 = scalar_select %p131, %s9, 7
        %s133 = scalar_lea.vmem %s0, %s132
      $region28: #{language_model_forward.2} parent=23 // pred_fallthru
        _
    $region24: #{language_model_forward.2} parent=5 // pred_fallthru
      _
    %p134 = scmp.le.s32.totalorder 1, %s9
    %p135 = scmp.lt.s32.totalorder %s9, 9
    %p136 = pnand %p134, %p135
    %p137 = pneg %p136
    // Predicated region
    $region29: #{language_model_forward.2} parent=5 // pred_check
      _
    $region30: #{language_model_forward.2} parent=5 // pred_check_branch
      %139 = sbr.rel (%p136) target = $region32
    $region31: #{language_model_forward.2} parent=5 // pred_region
      %s140 = ssub.s32 %s9, 1
      %p141 = scmp.lt.s32.totalorder %s14, 7
      %s142 = scalar_select %p141, %s14, 7
      %s143 = scalar_lea.vmem %s0, %s142
      %p144 = pneg %p35
      %p145 = pneg %p32
      %p146 = pneg %p56
      %p147 = pneg %p53
      %p148 = pneg %p77
      %p149 = pneg %p74
      %p150 = pneg %p103
      %p151 = pneg %p100
      %p152 = scmp.lt.s32.totalorder %s14, 7
      %s153 = scalar_select %p152, %s14, 7
      %s154 = smul.addr %s153, 2
      %s155 = scalar_lea.vmem %s3, %s154
      %p156 = scmp.lt.s32.totalorder %s14, 7
      %s157 = scalar_select %p156, %s14, 7
      %s158 = scalar_lea.vmem %s0, %s157
      %p159 = scmp.lt.s32.totalorder %s14, 7
      %s160 = scalar_select %p159, %s14, 7
      %s161 = smul.addr %s160, 2
      %s162 = scalar_lea.vmem %s3, %s161
      %p164 = scmp.eq.s32.totalorder %s14, 0
      // Predicated region
      $region33: #{language_model_forward.2} parent=31 // pred_check
        %p165 = pneg %p164
      $region34: #{language_model_forward.2} parent=31 // pred_check_branch
        %167 = sbr.rel (%p165) target = $region36
      $region35: #{language_model_forward.2} parent=31 // pred_region
        %vm168 = vcmask 254976
        %169 = vst.msk [vmem:[#allocation2] sm:$0x3] %vm168, 0.0
        %170 = vst.msk [vmem:[#allocation3] sm:$0x3] %vm168, 0.0
      $region36: #{language_model_forward.2} parent=31 // pred_fallthru
        _
      %v171 = vld [vmem:[%s158] sm:$0x1]
      %v172 = vld [vmem:[#allocation2] sm:$0x3]
      %v173 = vld [vmem:[#allocation3] sm:$0x3]
      %v174 = vpack.c.bf16 %v172, %v172
      %176 = vrot.lane.b32.xlu0 %v174, 32
      %v177 = vpop.permute.xlu0 %176
      %vm178 = vcmask 261120
      %v181 = vsel %vm178, %v171, %v177
      %v182 = vld [vmem:[%s1] sm:$0xf]
      %v183 = vld [vmem:[%s1 + $0x4] sm:$0xf]
      %v184 = vld [vmem:[%s1 + $0x8] sm:$0xf]
      %v185 = vld [vmem:[%s1 + $0xc] sm:$0xf]
      %v186 = vld [vmem:[%s1 + $0x10] sm:$0xf]
      %v187 = vld [vmem:[%s1 + $0x14] sm:$0xf]
      %v188 = vld [vmem:[%s1 + $0x18] sm:$0xf]
      %v189 = vld [vmem:[%s1 + $0x1c] sm:$0xf]
      %v190 = vld [vmem:[%s2] sm:$0x3]
      %v199 = vunpack.c.l.b16 %v182
      %v200 = vunpack.c.l.b16 %v183
      %v201 = vunpack.c.l.b16 %v184
      %v202 = vunpack.c.l.b16 %v185
      %v203 = vunpack.c.l.b16 %v186
      %v204 = vunpack.c.l.b16 %v187
      %v205 = vunpack.c.l.b16 %v188
      %v206 = vunpack.c.l.b16 %v189
      %v207 = vpack.c.b16 %v200, %v199
      %v208 = vpack.c.b16 %v202, %v201
      %v209 = vpack.c.b16 %v204, %v203
      %v210 = vpack.c.b16 %v206, %v205
      %vm215 = vcmask 523264
      %v216 = vsel %vm215, %v181, 0
      %218 = vmatprep.subr.bf16.mxu0 0
      %219 = vmatpush1.bf16.msra.mxu0 %v207
      %220 = vmatprep.subr.bf16.mxu0 0
      %221 = vmatpush1.bf16.msra.mxu0 %v208
      %222 = vmatprep.subr.bf16.mxu0 0
      %223 = vmatpush1.bf16.msra.mxu0 %v209
      %224 = vmatprep.subr.bf16.mxu0 0
      %225 = vmatpush1.bf16.msra.mxu0 %v210
      %226 = vmatprep.subr.bf16.mxu0 0
      %227 = vmatpush1.bf16.msra.mxu0 0
      %228 = vmatprep.subr.bf16.mxu0 0
      %229 = vmatpush1.bf16.msra.mxu0 0
      %230 = vmatprep.subr.bf16.mxu0 0
      %231 = vmatpush1.bf16.msra.mxu0 0
      %232 = vmatprep.subr.bf16.mxu0 0
      %233 = vmatpush1.bf16.msra.mxu0 0
      %234 = vmatprep.subr.bf16.mxu0 0
      %235 = vmatpush1.bf16.msra.mxu0 0
      %236 = vmatprep.subr.bf16.mxu0 0
      %237 = vmatpush1.bf16.msra.mxu0 0
      %238 = vmatprep.subr.bf16.mxu0 0
      %239 = vmatpush1.bf16.msra.mxu0 0
      %240 = vmatprep.subr.bf16.mxu0 0
      %241 = vmatpush1.bf16.msra.mxu0 0
      %242 = vmatprep.subr.bf16.mxu0 0
      %243 = vmatpush1.bf16.msra.mxu0 0
      %244 = vmatprep.subr.bf16.mxu0 0
      %245 = vmatpush1.bf16.msra.mxu0 0
      %246 = vmatprep.subr.bf16.mxu0 0
      %247 = vmatpush1.bf16.msra.mxu0 0
      %248 = vmatprep.subr.bf16.mxu0 0
      %249 = vmatpush1.bf16.msra.mxu0 0
      %250 = vmatprep.mubr.bf16.mxu0 0
      %251 = vmatmul.mubr.bf16.gmra.mrb[0].mxu0 %v216
      %v252 = vpop.f32.mrb[0].mxu0
      %v253 = vadd.f32 %v190, %v252
      %v254 = vpop.f32.mrb[0].mxu0
      %v255 = vpop.f32.mrb[0].mxu0
      %v256 = vpop.f32.mrb[0].mxu0
      %257 = vdwg.mxu0
      %v258 = vxor.u32 %v253, 2147483648
      %v259 = vmul.f32 %v258, 1.442695
      %v260 = vpow.pop %v259
      %v261 = vadd.f32 %v260, 1.0
      %v262 = vrcp.pop %v261
      %v263 = vmul.f32 1.0, %v262
      %v264 = vtanh.pop %v253
      %266 = vrot.lane.b32.xlu0 %v173, 32
      %v267 = vpop.permute.xlu0 %266
      %v269 = vmul.f32 %v263, %v267
      %271 = vrot.lane.b32.xlu0 %v264, 64
      %v272 = vpop.permute.xlu0 %271
      %v274 = vmul.f32 %v263, %v272
      %276 = vrot.lane.b32.xlu0 %v274, 32
      %v277 = vpop.permute.xlu0 %276
      %v279 = vadd.f32 %v269, %v277
      %v280 = vtanh.pop %v279
      %282 = vrot.lane.b32.xlu0 %v280, 64
      %v283 = vpop.permute.xlu0 %282
      %v285 = vmul.f32 %v263, %v283
      %287 = vrot.lane.b32.xlu0 %v285, 32
      %v288 = vpop.permute.xlu0 %287
      %vm290 = vcmask 254976
      %291 = vst.msk [vmem:[#allocation2] sm:$0x3] %vm290, %v288
      %293 = vrot.lane.b32.xlu0 %v279, 96
      %v294 = vpop.permute.xlu0 %293
      %296 = vst.msk [vmem:[#allocation3] sm:$0x3] %vm290, %v294
      %297 = vst.msk [vmem:[%s162] sm:$0x3] %vm290, %v288
      %p298 = scmp.lt.s32.totalorder %s14, 7
      %s299 = scalar_select %p298, %s14, 7
      %s300 = smul.addr %s299, 2
      %s301 = scalar_lea.vmem %s3, %s300
      // Predicated region
      $region37: #{language_model_forward.2} parent=31 // pred_check
        %p302 = pneg %p100
      $region38: #{language_model_forward.2} parent=31 // pred_check_branch
        %304 = sbr.rel (%p302) target = $region40
      $region39: #{language_model_forward.2} parent=31 // pred_region
        _
      $region40: #{language_model_forward.2} parent=31 // pred_fallthru
        _
    $region32: #{language_model_forward.2} parent=5 // pred_fallthru
      _
    %p305 = scmp.le.s32.totalorder 2, %s9
    // Predicated region
    $region41: #{language_model_forward.2} parent=5 // pred_check
      %p306 = pneg %p305
    $region42: #{language_model_forward.2} parent=5 // pred_check_branch
      %308 = sbr.rel (%p306) target = $region44
    $region43: #{language_model_forward.2} parent=5 // pred_region
      %s309 = ssub.s32 %s9, 2
      // Predicated region
      $region45: #{language_model_forward.2} parent=43 // pred_check
        %p310 = pneg %p106
      $region46: #{language_model_forward.2} parent=43 // pred_check_branch
        %312 = sbr.rel (%p310) target = $region48
      $region47: #{language_model_forward.2} parent=43 // pred_region
        %p313 = scmp.lt.s32.totalorder %s15, 7
        %s314 = scalar_select %p313, %s15, 7
        %s315 = smul.addr %s314, 2
        %s316 = scalar_lea.vmem %s3, %s315
      $region48: #{language_model_forward.2} parent=43 // pred_fallthru
        _
    $region44: #{language_model_forward.2} parent=5 // pred_fallthru
      _
  $region6: #{language_model_forward.2} parent=0 // loop_footer
    %s13 = sadd.s32 1, %s9
  $region7: #{language_model_forward.2} parent=0 // loop_footer_branch
    %8 = sbr.rel target = $region3
  $region8: #{language_model_forward.2} parent=0 // loop_exit
    _

// kernel: language_model_forward.3
$region0: #{language_model_forward.3}
  #allocation0 [shape = 'u32[]', space=smem, size = 0x4, offset = 0x4, fixed_abs, tag = 'smem constant byte address 0x4 - core index']
  #allocation1 [shape = 'u32[144,128]{1,0:T(1,128)}', space=vmem, size = 0x12000, scoped, tag = 'internal scratch']
  %s0 = inlined_call_operand.vmem [shape: f32[16,32], index: 0, kind: input, shape index: {}]
  %s1 = inlined_call_operand.vmem [shape: bf16[32,128], index: 1, kind: input, shape index: {}]
  %s2 = inlined_call_operand.vmem [shape: f32[1,128], index: 2, kind: input, shape index: {}]
  %s3 = inlined_call_operand.hbm [shape: f32[16,128], index: 3, kind: output, shape index: {}]
  %s4 = sld [smem:[#allocation0]]
  $region45: #{language_model_forward.3} parent=0
    _
  %s6 = ssub.s32 1, %s4
  %s7 = scalar_select 0, %s6, %s4
  $region1: #{language_model_forward.3} parent=0
    #allocation2 [shape = 'u8[8192]{0}', space=vmem, size = 0x2000, scoped, tag = 'output window, operand 0']
    #allocation3 [shape = 's32[2]{0}', space=sflag, size = 0x8, scoped, tag = 'scoped memory for language_model_forward.3']
    %8 = vsyncpa [#allocation3], 0
    %s9 = scalar_lea.sflag [#allocation3], 1
    %10 = vsyncpa %s9, 0
    loop: start=0, step=1, limit=4
    $region2: #{language_model_forward.3} parent=1 // loop_pre_header
      _
    $region3: #{language_model_forward.3} parent=1 // loop_header
      %s12 = sphi 0, %s16
      %p13 = scmp.ge.s32.totalorder %s12, 4
      %s22 = sphi 0, %s24
      %s25 = sphi 0, %s22
      %s26 = sphi 0, %s25
      %s42 = sphi 0, %s26
      %s46 = sphi 0, %s46
      %s48 = sphi 0, %s46
      %s49 = sphi 0, %s48
      %s63 = sphi 0, %s49
      %s67 = sphi 0, %s67
      %s69 = sphi 0, %s67
      %s70 = sphi 0, %s69
      %s84 = sphi 0, %s70
      %s90 = sphi 0, %s92
      %s93 = sphi 0, %s90
      %s94 = sphi 0, %s93
      %s110 = sphi 0, %s94
    $region4: #{language_model_forward.3} parent=1 // loop_header_branch
      %15 = sbr.rel (%p13) target = $region8
    $region5: #{language_model_forward.3} parent=1 // loop_body
      %s17 = ssub.s32 %s12, 1
      %s18 = ssub.s32 %s12, 2
      %s19 = sadd.s32 %s12, 1
      %s20 = ssub.s32 %s12, %s19
      %p21 = scmp.eq.s32.totalorder %s20, 0
      %s23 = sadd.s32 %s22, 1
      %s24 = scalar_select %p21, %s22, %s23
      %p27 = pneg %p21
      %p28 = scmp.eq.s32.totalorder %s12, 1
      %p29 = por %p27, %p28
      %p30 = scmp.ne.s32.totalorder %s22, %s25
      %p31 = scmp.eq.s32.totalorder %s12, 0
      %p32 = por %p30, %p31
      %p33 = scmp.ne.s32.totalorder %s22, %s25
      %p34 = scmp.eq.s32.totalorder %s17, 1
      %p35 = por %p33, %p34
      %p36 = scmp.ne.s32.totalorder %s25, %s26
      %p37 = scmp.eq.s32.totalorder %s17, 0
      %p38 = por %p36, %p37
      %p39 = scmp.ne.s32.totalorder %s25, %s26
      %p40 = scmp.eq.s32.totalorder %s18, 1
      %p41 = por %p39, %p40
      %p43 = scmp.ne.s32.totalorder %s26, %s42
      %p44 = scmp.eq.s32.totalorder %s18, 0
      %p45 = por %p43, %p44
      %s47 = sadd.s32 %s46, 1
      %p50 = scmp.eq.s32.totalorder %s12, 1
      %p51 = scmp.ne.s32.totalorder %s46, %s48
      %p52 = scmp.eq.s32.totalorder %s12, 0
      %p53 = por %p51, %p52
      %p54 = scmp.ne.s32.totalorder %s46, %s48
      %p55 = scmp.eq.s32.totalorder %s17, 1
      %p56 = por %p54, %p55
      %p57 = scmp.ne.s32.totalorder %s48, %s49
      %p58 = scmp.eq.s32.totalorder %s17, 0
      %p59 = por %p57, %p58
      %p60 = scmp.ne.s32.totalorder %s48, %s49
      %p61 = scmp.eq.s32.totalorder %s18, 1
      %p62 = por %p60, %p61
      %p64 = scmp.ne.s32.totalorder %s49, %s63
      %p65 = scmp.eq.s32.totalorder %s18, 0
      %p66 = por %p64, %p65
      %s68 = sadd.s32 %s67, 1
      %p71 = scmp.eq.s32.totalorder %s12, 1
      %p72 = scmp.ne.s32.totalorder %s67, %s69
      %p73 = scmp.eq.s32.totalorder %s12, 0
      %p74 = por %p72, %p73
      %p75 = scmp.ne.s32.totalorder %s67, %s69
      %p76 = scmp.eq.s32.totalorder %s17, 1
      %p77 = por %p75, %p76
      %p78 = scmp.ne.s32.totalorder %s69, %s70
      %p79 = scmp.eq.s32.totalorder %s17, 0
      %p80 = por %p78, %p79
      %p81 = scmp.ne.s32.totalorder %s69, %s70
      %p82 = scmp.eq.s32.totalorder %s18, 1
      %p83 = por %p81, %p82
      %p85 = scmp.ne.s32.totalorder %s70, %s84
      %p86 = scmp.eq.s32.totalorder %s18, 0
      %p87 = por %p85, %p86
      %s88 = ssub.s32 %s12, %s19
      %p89 = scmp.eq.s32.totalorder %s88, 0
      %s91 = sadd.s32 %s90, 1
      %s92 = scalar_select %p89, %s90, %s91
      %p95 = pneg %p89
      %p96 = scmp.eq.s32.totalorder %s12, 1
      %p97 = por %p95, %p96
      %p98 = scmp.ne.s32.totalorder %s90, %s93
      %p99 = scmp.eq.s32.totalorder %s12, 0
      %p100 = por %p98, %p99
      %p101 = scmp.ne.s32.totalorder %s90, %s93
      %p102 = scmp.eq.s32.totalorder %s17, 1
      %p103 = por %p101, %p102
      %p104 = scmp.ne.s32.totalorder %s93, %s94
      %p105 = scmp.eq.s32.totalorder %s17, 0
      %p106 = por %p104, %p105
      %p107 = scmp.ne.s32.totalorder %s93, %s94
      %p108 = scmp.eq.s32.totalorder %s18, 1
      %p109 = por %p107, %p108
      %p111 = scmp.ne.s32.totalorder %s94, %s110
      %p112 = scmp.eq.s32.totalorder %s18, 0
      %p113 = por %p111, %p112
      %p114 = scmp.le.s32.totalorder 1, %s12
      %p115 = scmp.lt.s32.totalorder %s12, 3
      %p116 = pnand %p114, %p115
      %p117 = pneg %p116
      // Predicated region
      $region9: #{language_model_forward.3} parent=5 // pred_check
        _
      $region10: #{language_model_forward.3} parent=5 // pred_check_branch
        %119 = sbr.rel (%p116) target = $region12
      $region11: #{language_model_forward.3} parent=5 // pred_region
        %s120 = ssub.s32 %s12, 1
        // Predicated region
        $region13: #{language_model_forward.3} parent=11 // pred_check
          %p121 = pneg %p59
        $region14: #{language_model_forward.3} parent=11 // pred_check_branch
          %123 = sbr.rel (%p121) target = $region16
        $region15: #{language_model_forward.3} parent=11 // pred_region
          _
        $region16: #{language_model_forward.3} parent=11 // pred_fallthru
          _
        // Predicated region
        $region17: #{language_model_forward.3} parent=11 // pred_check
          %p124 = pneg %p80
        $region18: #{language_model_forward.3} parent=11 // pred_check_branch
          %126 = sbr.rel (%p124) target = $region20
        $region19: #{language_model_forward.3} parent=11 // pred_region
          _
        $region20: #{language_model_forward.3} parent=11 // pred_fallthru
          _
      $region12: #{language_model_forward.3} parent=5 // pred_fallthru
        _
      %p127 = scmp.lt.s32.totalorder %s12, 2
      // Predicated region
      $region21: #{language_model_forward.3} parent=5 // pred_check
        %p128 = pneg %p127
      $region22: #{language_model_forward.3} parent=5 // pred_check_branch
        %130 = sbr.rel (%p128) target = $region24
      $region23: #{language_model_forward.3} parent=5 // pred_region
        // Predicated region
        $region25: #{language_model_forward.3} parent=23 // pred_check
          %p131 = pneg %p32
        $region26: #{language_model_forward.3} parent=23 // pred_check_branch
          %133 = sbr.rel (%p131) target = $region28
        $region27: #{language_model_forward.3} parent=23 // pred_region
          %p134 = scmp.lt.s32.totalorder %s12, 1
          %s135 = scalar_select %p134, %s12, 1
          %s136 = smul.addr %s135, 8
          %s137 = scalar_lea.vmem %s0, %s136
        $region28: #{language_model_forward.3} parent=23 // pred_fallthru
          _
      $region24: #{language_model_forward.3} parent=5 // pred_fallthru
        _
      %p138 = scmp.le.s32.totalorder 1, %s12
      %p139 = scmp.lt.s32.totalorder %s12, 3
      %p140 = pnand %p138, %p139
      %p141 = pneg %p140
      // Predicated region
      $region29: #{language_model_forward.3} parent=5 // pred_check
        _
      $region30: #{language_model_forward.3} parent=5 // pred_check_branch
        %143 = sbr.rel (%p140) target = $region32
      $region31: #{language_model_forward.3} parent=5 // pred_region
        %s144 = ssub.s32 %s12, 1
        %p145 = scmp.lt.s32.totalorder %s17, 1
        %s146 = scalar_select %p145, %s17, 1
        %s147 = smul.addr %s146, 8
        %s148 = scalar_lea.vmem %s0, %s147
        %p149 = pneg %p38
        %p150 = pneg %p35
        %p151 = pneg %p59
        %p152 = pneg %p56
        %p153 = pneg %p80
        %p154 = pneg %p77
        %p155 = pneg %p106
        %p156 = pneg %p103
        %s157 = sand.u32 %s93, 1
        %s158 = scalar_lea.sflag [#allocation3], %s157
        %s159 = sand.u32 %s93, 1
        %s160 = smul.addr %s159, 8
        %s161 = scalar_lea.vmem [#allocation2], %s160
        %p162 = scmp.lt.s32.totalorder %s17, 1
        %s163 = scalar_select %p162, %s17, 1
        %s164 = smul.addr %s163, 8
        %s165 = scalar_lea.vmem %s0, %s164
        %v167 = vld [vmem:[%s165] sm:$0xff]
        %v168 = vpack.c.bf16 %v167, %v167
        %v169 = vld [vmem:[%s1] sm:$0xf]
        %v170 = vld [vmem:[%s1 + $0x4] sm:$0xf]
        %v171 = vld [vmem:[%s1 + $0x8] sm:$0xf]
        %v172 = vld [vmem:[%s1 + $0xc] sm:$0xf]
        %v173 = vld [vmem:[%s2] sm:$0x1]
        %v175 = vlaneseq
        %v176 = vshrl.u32 %v175, 7
        %v177 = vsub.s32 0, %v176
        %v178 = vrot.slane %v173, %v177
        %v184 = vunpack.c.l.b16 %v169
        %v185 = vunpack.c.l.b16 %v170
        %v186 = vunpack.c.l.b16 %v171
        %v187 = vunpack.c.l.b16 %v172
        %v188 = vpack.c.b16 %v185, %v184
        %v189 = vpack.c.b16 %v187, %v186
        %vm192 = vcmask 261120
        %v194 = vsel %vm192, %v168, 0
        %196 = vmatprep.subr.bf16.mxu0 0
        %197 = vmatpush1.bf16.msra.mxu0 %v188
        %198 = vmatprep.subr.bf16.mxu0 0
        %199 = vmatpush1.bf16.msra.mxu0 %v189
        %200 = vmatprep.subr.bf16.mxu0 0
        %201 = vmatpush1.bf16.msra.mxu0 0
        %202 = vmatprep.subr.bf16.mxu0 0
        %203 = vmatpush1.bf16.msra.mxu0 0
        %204 = vmatprep.subr.bf16.mxu0 0
        %205 = vmatpush1.bf16.msra.mxu0 0
        %206 = vmatprep.subr.bf16.mxu0 0
        %207 = vmatpush1.bf16.msra.mxu0 0
        %208 = vmatprep.subr.bf16.mxu0 0
        %209 = vmatpush1.bf16.msra.mxu0 0
        %210 = vmatprep.subr.bf16.mxu0 0
        %211 = vmatpush1.bf16.msra.mxu0 0
        %212 = vmatprep.subr.bf16.mxu0 0
        %213 = vmatpush1.bf16.msra.mxu0 0
        %214 = vmatprep.subr.bf16.mxu0 0
        %215 = vmatpush1.bf16.msra.mxu0 0
        %216 = vmatprep.subr.bf16.mxu0 0
        %217 = vmatpush1.bf16.msra.mxu0 0
        %218 = vmatprep.subr.bf16.mxu0 0
        %219 = vmatpush1.bf16.msra.mxu0 0
        %220 = vmatprep.subr.bf16.mxu0 0
        %221 = vmatpush1.bf16.msra.mxu0 0
        %222 = vmatprep.subr.bf16.mxu0 0
        %223 = vmatpush1.bf16.msra.mxu0 0
        %224 = vmatprep.subr.bf16.mxu0 0
        %225 = vmatpush1.bf16.msra.mxu0 0
        %226 = vmatprep.subr.bf16.mxu0 0
        %227 = vmatpush1.bf16.msra.mxu0 0
        %228 = vmatprep.mubr.bf16.mxu0 0
        %229 = vmatmul.mubr.bf16.gmra.mrb[0].mxu0 %v194
        %v230 = vpop.f32.mrb[0].mxu0
        %v231 = vadd.f32 %v178, %v230
        %v232 = vpop.f32.mrb[0].mxu0
        %v233 = vpop.f32.mrb[0].mxu0
        %v234 = vpop.f32.mrb[0].mxu0
        %235 = vdwg.mxu0
        %236 = vmax.xlane.f32.xlu0 %v231
        %v237 = vpop.xlane.xlu0 %236
        %v238 = vsub.f32 %v231, %v237
        %v239 = vmul.f32 %v238, 1.442695
        %v240 = vpow.pop %v239
        %241 = vadd.xlane.f32.xlu0 %v240
        %v242 = vpop.xlane.xlu0 %241
        %v243 = vrcp.pop %v242
        %v244 = vmul.f32 %v240, %v243
        %245 = vst [vmem:[%s161] sm:$0xff] %v244
        %s246 = sand.u32 %s93, 1
        %s247 = scalar_lea.sflag [#allocation3], %s246
        %s248 = sand.u32 %s93, 1
        %s249 = smul.addr %s248, 8
        %s250 = scalar_lea.vmem [#allocation2], %s249
        // Predicated region
        $region33: #{language_model_forward.3} parent=31 // pred_check
          %p251 = pneg %p103
        $region34: #{language_model_forward.3} parent=31 // pred_check_branch
          %253 = sbr.rel (%p251) target = $region36
        $region35: #{language_model_forward.3} parent=31 // pred_region
          %s255 = ssub.s32 128, 128
          %256 = vsyncadd %s247, %s255
          %s257 = smul.addr %s17, 128
          %s258 = scalar_lea.hbm %s3, %s257
          %s260 = sshll.u32 %s250, 4
          %s261 = int_to_ptr.vmem [resolvable:$true] %s260
          %263 = dma.vmem_to_hbm [thread:$0]  %s261, 128, %s258, %s247
        $region36: #{language_model_forward.3} parent=31 // pred_fallthru
          _
      $region32: #{language_model_forward.3} parent=5 // pred_fallthru
        _
      %p264 = scmp.le.s32.totalorder 2, %s12
      // Predicated region
      $region37: #{language_model_forward.3} parent=5 // pred_check
        %p265 = pneg %p264
      $region38: #{language_model_forward.3} parent=5 // pred_check_branch
        %267 = sbr.rel (%p265) target = $region40
      $region39: #{language_model_forward.3} parent=5 // pred_region
        %s268 = ssub.s32 %s12, 2
        // Predicated region
        $region41: #{language_model_forward.3} parent=39 // pred_check
          %p269 = pneg %p109
        $region42: #{language_model_forward.3} parent=39 // pred_check_branch
          %271 = sbr.rel (%p269) target = $region44
        $region43: #{language_model_forward.3} parent=39 // pred_region
          %s272 = sand.u32 %s94, 1
          %s273 = scalar_lea.sflag [#allocation3], %s272
          %s274 = sand.u32 %s94, 1
          %s275 = smul.addr %s274, 8
          %s276 = scalar_lea.vmem [#allocation2], %s275
          %277 = dma.done %s273, 128
        $region44: #{language_model_forward.3} parent=39 // pred_fallthru
          _
      $region40: #{language_model_forward.3} parent=5 // pred_fallthru
        _
    $region6: #{language_model_forward.3} parent=1 // loop_footer
      %s16 = sadd.s32 1, %s12
    $region7: #{language_model_forward.3} parent=1 // loop_footer_branch
      %11 = sbr.rel target = $region3
    $region8: #{language_model_forward.3} parent=1 // loop_exit
      _
    %278 = vsyncpa [#allocation3], 1
    %s279 = scalar_lea.sflag [#allocation3], 1
    %280 = vsyncpa %s279, 1

</llo_original>
